<compile_context>
chip_gen: v7x
topology: tpu7x:2x2x1
jax: 0.10.0
libtpu: 0.0.40
codegen_flags: <defaults>
</compile_context>

<pallas_src>
import jax
import jax.numpy as jnp
from jax.experimental import pallas as pl
from jax.experimental.pallas import tpu as pltpu


def _slice_scatter_strip_kernel(x_ref, src_ref, out_ref):
    # Copy the lane strip that contains the scattered column, then overwrite
    # column 0 (start=0, end=1, step=1 is static) from src.
    out_ref[...] = x_ref[...]
    out_ref[:, 0:1] = src_ref[...]


def _choose_tile_m(M, itemsize, max_tile=2048, target_steps=8):
    """Row-tile: multiple of the packed-sublane factor, <= max_tile, and small
    enough that the grid has ~target_steps steps (v7x megacore split)."""
    sub = max(8, 32 // max(1, itemsize))  # 8 for f32, 16 for bf16, 32 for int8
    if M <= sub:
        return M  # full-dim block is always a legal block shape
    t = max(sub, ((M // target_steps) // sub) * sub)
    return min(t, max_tile)


def _slice_scatter_impl(x, src):
    M, N = x.shape
    assert src.shape == (M, 1), src.shape
    assert src.dtype == x.dtype

    # Only the lane strip holding column 0 needs to be touched; the rest of
    # the output comes straight from the aliased x buffer.
    strip_n = N if N < 128 else 128
    itemsize = jnp.dtype(x.dtype).itemsize
    tile_m = _choose_tile_m(M, itemsize)
    grid = (pl.cdiv(M, tile_m),)

    cost = pl.CostEstimate(
        flops=0,
        transcendentals=0,
        # strip read + strip write + src read
        bytes_accessed=2 * M * strip_n * itemsize + M * itemsize,
    )

    return pl.pallas_call(
        _slice_scatter_strip_kernel,
        out_shape=jax.ShapeDtypeStruct((M, N), x.dtype),
        grid=grid,
        in_specs=[
            pl.BlockSpec((tile_m, strip_n), lambda i: (i, 0)),  # x strip
            pl.BlockSpec((tile_m, 1), lambda i: (i, 0)),        # src column
        ],
        out_specs=pl.BlockSpec((tile_m, strip_n), lambda i: (i, 0)),
        input_output_aliases={0: 0},  # out shares x's (donated) buffer
        compiler_params=pltpu.CompilerParams(
            dimension_semantics=("parallel",),
        ),
        cost_estimate=cost,
    )(x, src)


# Public entry point: donation makes input_output_aliases a true in-place
# update (no defensive copy).  Callers must not reuse `x` afterwards.
slice_scatter = jax.jit(_slice_scatter_impl, donate_argnums=0)


if __name__ == "__main__":
    key = jax.random.PRNGKey(0)
    kx, ks, kx2, ks2, kx3, ks3 = jax.random.split(key, 6)

    # Small shape matching the ([-1, -1], [-1, -1]) annotation.
    # References are computed BEFORE the call since x is donated.
    x = jax.random.normal(kx, (8, 16), dtype=jnp.float32)
    src = jax.random.normal(ks, (8, 1), dtype=jnp.float32)
    ref = x.at[:, 0:1].set(src)
    out = jax.block_until_ready(slice_scatter(x, src))
    assert out.shape == ref.shape and out.dtype == ref.dtype
    assert jnp.allclose(out, ref), "slice_scatter mismatch (small case)"

    # Lane-aligned case exercising the strip + aliasing + multi-step grid path
    # (N > 128: only the first 128 columns are DMA'd; grid has 8 steps).
    x2 = jax.random.normal(kx2, (64, 256), dtype=jnp.float32)
    src2 = jax.random.normal(ks2, (64, 1), dtype=jnp.float32)
    ref2 = x2.at[:, 0:1].set(src2)
    out2 = jax.block_until_ready(slice_scatter(x2, src2))
    assert jnp.allclose(out2, ref2), "slice_scatter mismatch (strip case)"

    # Awkward M (not a multiple of 8): cdiv grid with a masked partial tail.
    x3 = jax.random.normal(kx3, (20, 40), dtype=jnp.float32)
    src3 = jax.random.normal(ks3, (20, 1), dtype=jnp.float32)
    ref3 = x3.at[:, 0:1].set(src3)
    out3 = jax.block_until_ready(slice_scatter(x3, src3))
    assert jnp.allclose(out3, ref3), "slice_scatter mismatch (ragged case)"

    print("KERNEL_OK")
</pallas_src>

<mosaic_0001>
module attributes {stable_mosaic.version = 11 : i64} {
  func.func @_slice_scatter_strip_kernel(%arg0: i32, %arg1: memref<8x16xf32, #tpu.memory_space<vmem>>, %arg2: memref<8x1xf32, #tpu.memory_space<vmem>>, %arg3: memref<8x16xf32, #tpu.memory_space<vmem>>) attributes {dimension_semantics = [#tpu.dimension_semantics<parallel>], iteration_bounds = array<i64: 1>, scalar_prefetch = 0 : i64, scratch_operands = 0 : i64, tpu.core_type = #tpu.core_type<tc>, window_params = [{transform_indices = @transform_0, window_bounds = array<i64: 8, 16>}, {transform_indices = @transform_1, window_bounds = array<i64: 8, 1>}, {transform_indices = @transform_2, window_bounds = array<i64: 8, 16>}]} {
    %c0 = arith.constant 0 : index
    %c0_0 = arith.constant 0 : index
    %0 = vector.load %arg1[%c0, %c0_0] : memref<8x16xf32, #tpu.memory_space<vmem>>, vector<8x16xf32>
    %c0_1 = arith.constant 0 : index
    %c0_2 = arith.constant 0 : index
    %1 = vector.load %arg3[%c0_1, %c0_2] : memref<8x16xf32, #tpu.memory_space<vmem>>, vector<8x16xf32>
    tpu.vector_store %arg3[%c0_1, %c0_2], %0 {strides = array<i32>} : memref<8x16xf32, #tpu.memory_space<vmem>>, vector<8x16xf32>,
    %c0_3 = arith.constant 0 : index
    %c0_4 = arith.constant 0 : index
    %2 = vector.load %arg2[%c0_3, %c0_4] : memref<8x1xf32, #tpu.memory_space<vmem>>, vector<8x1xf32>
    %c0_5 = arith.constant 0 : index
    %c0_6 = arith.constant 0 : index
    %3 = vector.load %arg3[%c0_5, %c0_6] : memref<8x16xf32, #tpu.memory_space<vmem>>, vector<8x1xf32>
    tpu.vector_store %arg3[%c0_5, %c0_6], %2 {strides = array<i32>} : memref<8x16xf32, #tpu.memory_space<vmem>>, vector<8x1xf32>,
    return
  }
  func.func @transform_0(%arg0: i32) -> (i32, i32) {
    %c0_i32 = arith.constant 0 : i32
    %c0_i32_0 = arith.constant 0 : i32
    return %arg0, %c0_i32 : i32, i32
  }
  func.func @transform_1(%arg0: i32) -> (i32, i32) {
    %c0_i32 = arith.constant 0 : i32
    %c0_i32_0 = arith.constant 0 : i32
    return %arg0, %c0_i32 : i32, i32
  }
  func.func @transform_2(%arg0: i32) -> (i32, i32) {
    %c0_i32 = arith.constant 0 : i32
    %c0_i32_0 = arith.constant 0 : i32
    return %arg0, %c0_i32 : i32, i32
  }
}

</mosaic_0001>

<llo_original>
// kernel: _slice_scatter_impl.1
$region0: #{_slice_scatter_impl.1}
  #allocation0 [shape = 'u32[]', space=smem, size = 0x4, offset = 0x4, fixed_abs, tag = 'smem constant byte address 0x4 - core index']
  #allocation1 [shape = 'u32[144,128]{1,0:T(1,128)}', space=vmem, size = 0x12000, scoped, tag = 'internal scratch']
  %s0 = inlined_call_operand.hbm [shape: f32[8,16], index: 0, kind: input, shape index: {}, may-alias: {0,2}]
  %s1 = inlined_call_operand.vmem [shape: f32[8,1], index: 1, kind: input, shape index: {}]
  %s2 = inlined_call_operand.hbm [shape: f32[8,16], index: 2, kind: output, shape index: {}, may-alias: {0,2}]
  %s3 = sld [smem:[#allocation0]]
  $region22: #{_slice_scatter_impl.1} parent=0
    _
  %s5 = ssub.s32 1, %s3
  %s6 = scalar_select 0, %s5, %s3
  $region1: #{_slice_scatter_impl.1} parent=0
    #allocation2 [shape = 'u8[4096]{0}', space=vmem, size = 0x1000, scoped, tag = 'input window, operand 0, single buffered']
    #allocation3 [shape = 's32[1]{0}', space=sflag, size = 0x4, scoped, tag = 'scoped memory for _slice_scatter_impl.1']
    #allocation4 [shape = 's32[1]{0}', space=sflag, size = 0x4, scoped, tag = 'scoped memory for _slice_scatter_impl.1']
    #allocation5 [shape = 'u8[4096]{0}', space=vmem, size = 0x1000, scoped, tag = 'output window, operand 0, single buffered']
    %7 = vsyncpa [#allocation3], 0
    %8 = vsyncpa [#allocation4], 0
    // Predicated region
    $region2: #{_slice_scatter_impl.1} parent=1 // pred_check
      _
    $region3: #{_slice_scatter_impl.1} parent=1 // pred_check_branch
      %10 = sbr.rel (0) target = $region5
    $region4: #{_slice_scatter_impl.1} parent=1 // pred_region
      %s12 = ssub.s32 128, 128
      %13 = vsyncadd [#allocation3], %s12
      %s15 = sshll.u32 [#allocation2], 4
      %s16 = int_to_ptr.vmem [resolvable:$true] %s15
      %18 = dma.hbm_to_vmem [thread:$0]  %s0, 128, %s16, [#allocation3]
    $region5: #{_slice_scatter_impl.1} parent=1 // pred_fallthru
      _
    // Predicated region
    $region6: #{_slice_scatter_impl.1} parent=1 // pred_check
      _
    $region7: #{_slice_scatter_impl.1} parent=1 // pred_check_branch
      %20 = sbr.rel (0) target = $region9
    $region8: #{_slice_scatter_impl.1} parent=1 // pred_region
      _
    $region9: #{_slice_scatter_impl.1} parent=1 // pred_fallthru
      _
    // Predicated region
    $region10: #{_slice_scatter_impl.1} parent=1 // pred_check
      _
    $region11: #{_slice_scatter_impl.1} parent=1 // pred_check_branch
      %22 = sbr.rel (0) target = $region13
    $region12: #{_slice_scatter_impl.1} parent=1 // pred_region
      %23 = dma.done [#allocation3], 128
    $region13: #{_slice_scatter_impl.1} parent=1 // pred_fallthru
      _
    %v24 = vld [vmem:[#allocation2] sm:$0xff]
    %vm25 = vcmask 130048
    %26 = vst.msk [vmem:[#allocation5] sm:$0xff] %vm25, %v24
    %v27 = vld [vmem:[%s1] sm:$0xff]
    %vm28 = vcmask 7168
    %29 = vst.msk [vmem:[#allocation5] sm:$0xff] %vm28, %v27
    // Predicated region
    $region14: #{_slice_scatter_impl.1} parent=1 // pred_check
      _
    $region15: #{_slice_scatter_impl.1} parent=1 // pred_check_branch
      %31 = sbr.rel (0) target = $region17
    $region16: #{_slice_scatter_impl.1} parent=1 // pred_region
      %s33 = ssub.s32 128, 128
      %34 = vsyncadd [#allocation4], %s33
      %s36 = sshll.u32 [#allocation5], 4
      %s37 = int_to_ptr.vmem [resolvable:$true] %s36
      %39 = dma.vmem_to_hbm [thread:$0]  %s37, 128, %s2, [#allocation4]
    $region17: #{_slice_scatter_impl.1} parent=1 // pred_fallthru
      _
    // Predicated region
    $region18: #{_slice_scatter_impl.1} parent=1 // pred_check
      _
    $region19: #{_slice_scatter_impl.1} parent=1 // pred_check_branch
      %41 = sbr.rel (0) target = $region21
    $region20: #{_slice_scatter_impl.1} parent=1 // pred_region
      %42 = dma.done [#allocation4], 128
    $region21: #{_slice_scatter_impl.1} parent=1 // pred_fallthru
      _
    %43 = vsyncpa [#allocation3], 1
    %44 = vsyncpa [#allocation4], 1

</llo_original>
